<compile_context>
chip_gen: v7x
topology: tpu7x:2x2x1
jax: 0.10.0
libtpu: 0.0.40
codegen_flags: <defaults>
</compile_context>

<pallas_src>
import jax
import jax.numpy as jnp
from jax.experimental import pallas as pl
from jax.experimental.pallas import tpu as pltpu


def _exp_kernel(x_ref, o_ref):
    # Elementwise exp on the whole VMEM tile (EUP handles the transcendental).
    o_ref[...] = jnp.exp(x_ref[...])


def _sublane_for(dtype) -> int:
    # Packed sublane count per vreg: f32 -> 8, bf16/f16 -> 16, int8/fp8 -> 32.
    itemsize = jnp.dtype(dtype).itemsize
    return {4: 8, 2: 16, 1: 32}.get(itemsize, 8)


def exponential(x: jax.Array, *, target_block_bytes: int = 1 << 20) -> jax.Array:
    """Elementwise exp via a Pallas TPU kernel. Matches torch.exp(x)."""
    orig_shape = x.shape
    dtype = x.dtype
    n = x.size
    itemsize = jnp.dtype(dtype).itemsize
    sublane = _sublane_for(dtype)

    # Pick the widest lane-dense last dim C (multiple of 128) such that the
    # flat array reshapes for free: rows = n // C is a multiple of the packed
    # sublane count. Wide C -> unmasked full-width vst + big DMAs.
    chosen_c = None
    for cand in (8192, 4096, 2048, 1024, 512, 256, 128):
        if n % cand == 0 and (n // cand) % sublane == 0:
            chosen_c = cand
            break

    if chosen_c is not None:
        # Copy-free path: no pad copy, no output slice.
        x2d = x.reshape(n // chosen_c, chosen_c)
        padded_tail = False
    else:
        # Rare unaligned path: pad up to an aligned slab, slice on the way out.
        chosen_c = 512
        rows = pl.cdiv(n, chosen_c)
        rows_padded = ((rows + sublane - 1) // sublane) * sublane
        flat = jnp.zeros((rows_padded * chosen_c,), dtype=dtype)
        flat = flat.at[:n].set(x.reshape(-1))
        x2d = flat.reshape(rows_padded, chosen_c)
        padded_tail = True

    R, C = x2d.shape

    # Row tile: ~1 MiB per block (amortizes per-step overhead; with
    # double-buffered in+out that's ~4 MiB VMEM, far under the 32 MiB scoped
    # limit on v5e/v6e/v7x), a multiple of the sublane count, and capped so
    # the 'parallel' grid axis has >= 2 programs when the input allows it.
    tr = (target_block_bytes // (C * itemsize)) // sublane * sublane
    tr = max(tr, sublane)
    tr = min(tr, R)
    if R >= 2 * sublane:
        tr = min(tr, (R // 2) // sublane * sublane)
    grid = (pl.cdiv(R, tr),)  # ragged last block is fine (discarded pad region)

    out2d = pl.pallas_call(
        _exp_kernel,
        out_shape=jax.ShapeDtypeStruct((R, C), dtype),
        grid_spec=pltpu.PrefetchScalarGridSpec(
            num_scalar_prefetch=0,
            grid=grid,
            in_specs=[pl.BlockSpec((tr, C), lambda i: (i, 0))],
            out_specs=pl.BlockSpec((tr, C), lambda i: (i, 0)),
        ),
        compiler_params=pltpu.CompilerParams(
            dimension_semantics=("parallel",)
        ),
    )(x2d)

    if padded_tail:
        return out2d.reshape(-1)[:n].reshape(orig_shape)
    return out2d.reshape(orig_shape)


if __name__ == "__main__":
    key = jax.random.PRNGKey(0)
    x = jax.random.normal(key, (2, 4, 16, 16), dtype=jnp.float32)

    y = exponential(x)
    jax.block_until_ready(y)

    # Correctness check against plain JAX (== torch.exp semantics).
    y_ref = jnp.exp(x)
    assert y.shape == x.shape and y.dtype == x.dtype
    assert jnp.allclose(y, y_ref, rtol=1e-6, atol=1e-6)

    print("KERNEL_OK")
</pallas_src>

<mosaic_0001>
module attributes {stable_mosaic.version = 11 : i64} {
  func.func @_exp_kernel(%arg0: i32, %arg1: memref<8x256xf32, #tpu.memory_space<vmem>>, %arg2: memref<8x256xf32, #tpu.memory_space<vmem>>) attributes {dimension_semantics = [#tpu.dimension_semantics<parallel>], iteration_bounds = array<i64: 1>, scalar_prefetch = 0 : i64, scratch_operands = 0 : i64, tpu.core_type = #tpu.core_type<tc>, window_params = [{transform_indices = @transform_0, window_bounds = array<i64: 8, 256>}, {transform_indices = @transform_1, window_bounds = array<i64: 8, 256>}]} {
    %c0 = arith.constant 0 : index
    %c0_0 = arith.constant 0 : index
    %0 = vector.load %arg1[%c0, %c0_0] : memref<8x256xf32, #tpu.memory_space<vmem>>, vector<8x256xf32>
    %1 = math.exp %0 : vector<8x256xf32>
    %c0_1 = arith.constant 0 : index
    %c0_2 = arith.constant 0 : index
    %2 = vector.load %arg2[%c0_1, %c0_2] : memref<8x256xf32, #tpu.memory_space<vmem>>, vector<8x256xf32>
    tpu.vector_store %arg2[%c0_1, %c0_2], %1 {strides = array<i32>} : memref<8x256xf32, #tpu.memory_space<vmem>>, vector<8x256xf32>,
    return
  }
  func.func @transform_0(%arg0: i32) -> (i32, i32) {
    %c0_i32 = arith.constant 0 : i32
    %c0_i32_0 = arith.constant 0 : i32
    return %arg0, %c0_i32 : i32, i32
  }
  func.func @transform_1(%arg0: i32) -> (i32, i32) {
    %c0_i32 = arith.constant 0 : i32
    %c0_i32_0 = arith.constant 0 : i32
    return %arg0, %c0_i32 : i32, i32
  }
}

</mosaic_0001>

<llo_original>
// kernel: tpu_custom_call.1
$region0: #{tpu_custom_call.1}
  #allocation0 [shape = 'u32[]', space=smem, size = 0x4, offset = 0x4, fixed_abs, tag = 'smem constant byte address 0x4 - core index']
  #allocation1 [shape = 'u32[144,128]{1,0:T(1,128)}', space=vmem, size = 0x12000, scoped, tag = 'internal scratch']
  %s0 = inlined_call_operand.hbm [shape: f32[8,256], index: 0, kind: input, shape index: {}]
  %s1 = inlined_call_operand.hbm [shape: f32[8,256], index: 1, kind: output, shape index: {}]
  %s2 = sld [smem:[#allocation0]]
  $region18: #{tpu_custom_call.1} parent=0
    _
  %s4 = ssub.s32 1, %s2
  %s5 = scalar_select 0, %s4, %s2
  $region1: #{tpu_custom_call.1} parent=0
    #allocation2 [shape = 'u8[8192]{0}', space=vmem, size = 0x2000, scoped, tag = 'input window, operand 0, single buffered']
    #allocation3 [shape = 's32[1]{0}', space=sflag, size = 0x4, scoped, tag = 'scoped memory for tpu_custom_call.1']
    #allocation4 [shape = 's32[1]{0}', space=sflag, size = 0x4, scoped, tag = 'scoped memory for tpu_custom_call.1']
    #allocation5 [shape = 'u8[8192]{0}', space=vmem, size = 0x2000, scoped, tag = 'output window, operand 0, single buffered']
    %6 = vsyncpa [#allocation3], 0
    %7 = vsyncpa [#allocation4], 0
    // Predicated region
    $region2: #{tpu_custom_call.1} parent=1 // pred_check
      _
    $region3: #{tpu_custom_call.1} parent=1 // pred_check_branch
      %9 = sbr.rel (0) target = $region5
    $region4: #{tpu_custom_call.1} parent=1 // pred_region
      %s11 = ssub.s32 256, 256
      %12 = vsyncadd [#allocation3], %s11
      %s14 = sshll.u32 [#allocation2], 4
      %s15 = int_to_ptr.vmem [resolvable:$true] %s14
      %17 = dma.hbm_to_vmem [thread:$0]  %s0, 256, %s15, [#allocation3]
    $region5: #{tpu_custom_call.1} parent=1 // pred_fallthru
      _
    // Predicated region
    $region6: #{tpu_custom_call.1} parent=1 // pred_check
      _
    $region7: #{tpu_custom_call.1} parent=1 // pred_check_branch
      %19 = sbr.rel (0) target = $region9
    $region8: #{tpu_custom_call.1} parent=1 // pred_region
      %20 = dma.done [#allocation3], 256
    $region9: #{tpu_custom_call.1} parent=1 // pred_fallthru
      _
    %v21 = vld [vmem:[#allocation2] sm:$0xff]
    %v22 = vld [vmem:[#allocation2 + $0x8] sm:$0xff]
    %v23 = vmul.f32 %v21, 1.442695
    %v24 = vpow.pop %v23
    %v25 = vmul.f32 %v22, 1.442695
    %v26 = vpow.pop %v25
    %27 = vst [vmem:[#allocation5] sm:$0xff] %v24
    %28 = vst [vmem:[#allocation5 + $0x8] sm:$0xff] %v26
    // Predicated region
    $region10: #{tpu_custom_call.1} parent=1 // pred_check
      _
    $region11: #{tpu_custom_call.1} parent=1 // pred_check_branch
      %30 = sbr.rel (0) target = $region13
    $region12: #{tpu_custom_call.1} parent=1 // pred_region
      %s32 = ssub.s32 256, 256
      %33 = vsyncadd [#allocation4], %s32
      %s35 = sshll.u32 [#allocation5], 4
      %s36 = int_to_ptr.vmem [resolvable:$true] %s35
      %38 = dma.vmem_to_hbm [thread:$0]  %s36, 256, %s1, [#allocation4]
    $region13: #{tpu_custom_call.1} parent=1 // pred_fallthru
      _
    // Predicated region
    $region14: #{tpu_custom_call.1} parent=1 // pred_check
      _
    $region15: #{tpu_custom_call.1} parent=1 // pred_check_branch
      %40 = sbr.rel (0) target = $region17
    $region16: #{tpu_custom_call.1} parent=1 // pred_region
      %41 = dma.done [#allocation4], 256
    $region17: #{tpu_custom_call.1} parent=1 // pred_fallthru
      _
    %42 = vsyncpa [#allocation3], 1
    %43 = vsyncpa [#allocation4], 1

</llo_original>
